<compile_context>
chip_gen: v5e
topology: v5e:2x2
jax: 0.10.0
libtpu: 0.0.40
codegen_flags: <defaults>
</compile_context>

<pallas_src>
import jax
import jax.numpy as jnp
from jax.experimental import pallas as pl
from jax.experimental.pallas import tpu as pltpu


def _add_kernel(a_ref, b_ref, o_ref):
    o_ref[...] = a_ref[...] + b_ref[...]


def _choose_width(n: int) -> int:
    """Pick a lane-friendly last dim that exactly divides n (no padding ever)."""
    # Best case: widest multiple of 128 (unmasked full-width lanes).
    for w in range(8192, 127, -128):
        if n % w == 0:
            return w
    # Ragged case (n not divisible by 128): largest divisor <= 2048.  The block's
    # last dim then equals the full array extent, which the (8,128) rule allows;
    # Mosaic masks the partial lane tile, no host-side pad/slice needed.
    for w in range(min(2048, n), 0, -1):
        if n % w == 0:
            return w
    return max(n, 1)


def pallas_add(a: jax.Array, b: jax.Array) -> jax.Array:
    assert a.shape == b.shape and a.dtype == b.dtype
    orig_shape = a.shape
    n = a.size
    dtype_bytes = jnp.dtype(a.dtype).itemsize
    # Sublane packing: 8 rows for 32-bit, 16 for 16-bit, 32 for 8-bit dtypes.
    sublane = max(8, 32 // dtype_bytes)

    width = _choose_width(n)
    rows = n // width
    a2 = a.reshape(rows, width)   # contiguous reshape: free view, no HBM copy
    b2 = b.reshape(rows, width)

    row_bytes = width * dtype_bytes
    # ~4 MiB per input block: per-step overhead (~0.35 us) amortized to a few %,
    # while 3 arrays x 2 double-buffers = 24 MiB stays under v7x's 32 MiB scoped VMEM.
    target_block_bytes = 4 << 20

    if rows <= sublane:
        # Tiny arrays: single full-extent block (full dims always satisfy tiling).
        block_rows = rows
    else:
        block_rows = min(rows, max(sublane, target_block_bytes // row_bytes))
        if block_rows < rows:
            # Keep the block a multiple of the sublane tile; cdiv grid masks the
            # ragged last row-block.
            block_rows = max(sublane, (block_rows // sublane) * sublane)
        elif rows >= 2 * sublane and ((rows + 1) // 2) * row_bytes >= (1 << 20):
            # Whole array would be one block: split in two only when each half
            # still streams >= ~1 MiB/input (v7x dual-TC win, no v5e/v6e penalty
            # for small inputs).
            half = (rows + 1) // 2
            block_rows = ((half + sublane - 1) // sublane) * sublane

    grid = (pl.cdiv(rows, block_rows),)
    block_bytes = block_rows * row_bytes

    out = pl.pallas_call(
        _add_kernel,
        out_shape=jax.ShapeDtypeStruct((rows, width), a.dtype),
        grid_spec=pltpu.PrefetchScalarGridSpec(
            num_scalar_prefetch=0,
            grid=grid,
            in_specs=[
                pl.BlockSpec((block_rows, width), lambda i: (i, 0)),
                pl.BlockSpec((block_rows, width), lambda i: (i, 0)),
            ],
            out_specs=pl.BlockSpec((block_rows, width), lambda i: (i, 0)),
        ),
        compiler_params=pltpu.CompilerParams(
            dimension_semantics=("parallel",),
            # 3 arrays x 2 double-buffers x block, with headroom; <= 32 MiB keeps
            # it portable to v7x's smaller VMEM.
            vmem_limit_bytes=int(min(max(8 * block_bytes, 16 << 20), 32 << 20)),
        ),
        cost_estimate=pl.CostEstimate(
            flops=n, transcendentals=0, bytes_accessed=3 * n * dtype_bytes
        ),
    )(a2, b2)

    return out.reshape(orig_shape)


if __name__ == "__main__":
    key = jax.random.PRNGKey(0)
    k1, k2, k3, k4 = jax.random.split(key, 4)

    # Small NCHW shape consistent with the module's forward (add of two
    # identically-shaped NCHW tensors; original was (1, 1232, 14, 14)).
    shape = (2, 4, 16, 16)
    x105 = jax.random.normal(k1, shape, dtype=jnp.float32)
    x119 = jax.random.normal(k2, shape, dtype=jnp.float32)
    y = pallas_add(x105, x119)
    jax.block_until_ready(y)
    ref = x105 + x119
    assert y.shape == ref.shape and y.dtype == ref.dtype
    assert jnp.allclose(y, ref), "mismatch vs reference add (aligned path)"

    # Also exercise the ragged path (element count not a multiple of 128),
    # mirroring the production 14x14 spatial layout.
    shape2 = (1, 44, 14, 14)
    a2 = jax.random.normal(k3, shape2, dtype=jnp.float32)
    b2 = jax.random.normal(k4, shape2, dtype=jnp.float32)
    y2 = pallas_add(a2, b2)
    jax.block_until_ready(y2)
    ref2 = a2 + b2
    assert y2.shape == ref2.shape and y2.dtype == ref2.dtype
    assert jnp.allclose(y2, ref2), "mismatch vs reference add (ragged path)"

    print("KERNEL_OK")
</pallas_src>

<mosaic_0001>
module attributes {stable_mosaic.version = 11 : i64} {
  func.func @_add_kernel(%arg0: i32, %arg1: memref<1x2048xf32, #tpu.memory_space<vmem>>, %arg2: memref<1x2048xf32, #tpu.memory_space<vmem>>, %arg3: memref<1x2048xf32, #tpu.memory_space<vmem>>) attributes {dimension_semantics = [#tpu.dimension_semantics<parallel>], iteration_bounds = array<i64: 1>, scalar_prefetch = 0 : i64, scratch_operands = 0 : i64, tpu.core_type = #tpu.core_type<tc>, window_params = [{transform_indices = @transform_0, window_bounds = array<i64: 1, 2048>}, {transform_indices = @transform_1, window_bounds = array<i64: 1, 2048>}, {transform_indices = @transform_2, window_bounds = array<i64: 1, 2048>}]} {
    %c0 = arith.constant 0 : index
    %c0_0 = arith.constant 0 : index
    %0 = vector.load %arg1[%c0, %c0_0] : memref<1x2048xf32, #tpu.memory_space<vmem>>, vector<1x2048xf32>
    %c0_1 = arith.constant 0 : index
    %c0_2 = arith.constant 0 : index
    %1 = vector.load %arg2[%c0_1, %c0_2] : memref<1x2048xf32, #tpu.memory_space<vmem>>, vector<1x2048xf32>
    %2 = arith.addf %0, %1 : vector<1x2048xf32>
    %c0_3 = arith.constant 0 : index
    %c0_4 = arith.constant 0 : index
    %3 = vector.load %arg3[%c0_3, %c0_4] : memref<1x2048xf32, #tpu.memory_space<vmem>>, vector<1x2048xf32>
    tpu.vector_store %arg3[%c0_3, %c0_4], %2 {strides = array<i32>} : memref<1x2048xf32, #tpu.memory_space<vmem>>, vector<1x2048xf32>,
    return
  }
  func.func @transform_0(%arg0: i32) -> (i32, i32) {
    %c0_i32 = arith.constant 0 : i32
    %c0_i32_0 = arith.constant 0 : i32
    return %arg0, %c0_i32 : i32, i32
  }
  func.func @transform_1(%arg0: i32) -> (i32, i32) {
    %c0_i32 = arith.constant 0 : i32
    %c0_i32_0 = arith.constant 0 : i32
    return %arg0, %c0_i32 : i32, i32
  }
  func.func @transform_2(%arg0: i32) -> (i32, i32) {
    %c0_i32 = arith.constant 0 : i32
    %c0_i32_0 = arith.constant 0 : i32
    return %arg0, %c0_i32 : i32, i32
  }
}

</mosaic_0001>

<llo_original>
// kernel: tpu_custom_call.1
$region0: #{tpu_custom_call.1}
  #allocation0 [shape = 'u32[]', space=smem, size = 0x4, offset = 0x4, fixed_abs, tag = 'smem constant byte address 0x4 - core index']
  #allocation1 [shape = 'u32[72,128]{1,0:T(1,128)}', space=vmem, size = 0x9000, scoped, tag = 'internal scratch']
  %s0 = inlined_call_operand.hbm [shape: f32[1,2048], index: 0, kind: input, shape index: {}]
  %s1 = inlined_call_operand.hbm [shape: f32[1,2048], index: 1, kind: input, shape index: {}]
  %s2 = inlined_call_operand.hbm [shape: f32[1,2048], index: 2, kind: output, shape index: {}]
  %s3 = sld [smem:[#allocation0]]
  $region26: #{tpu_custom_call.1} parent=0
    _
  %s5 = ssub.s32 1, %s3
  %s6 = scalar_select 0, %s5, %s3
  $region1: #{tpu_custom_call.1} parent=0
    #allocation2 [shape = 'u8[8192]{0}', space=vmem, size = 0x2000, scoped, tag = 'input window, operand 0, single buffered']
    #allocation3 [shape = 's32[1]{0}', space=sflag, size = 0x4, scoped, tag = 'scoped memory for tpu_custom_call.1']
    #allocation4 [shape = 's32[1]{0}', space=sflag, size = 0x4, scoped, tag = 'scoped memory for tpu_custom_call.1']
    #allocation5 [shape = 'u8[8192]{0}', space=vmem, size = 0x2000, scoped, tag = 'input window, operand 1, single buffered']
    #allocation6 [shape = 's32[1]{0}', space=sflag, size = 0x4, scoped, tag = 'scoped memory for tpu_custom_call.1']
    #allocation7 [shape = 'u8[8192]{0}', space=vmem, size = 0x2000, scoped, tag = 'output window, operand 0, single buffered']
    %7 = vsyncpa [#allocation3], 0
    %8 = vsyncpa [#allocation6], 0
    %9 = vsyncpa [#allocation4], 0
    // Predicated region
    $region2: #{tpu_custom_call.1} parent=1 // pred_check
      _
    $region3: #{tpu_custom_call.1} parent=1 // pred_check_branch
      %11 = sbr.rel (0) target = $region5
    $region4: #{tpu_custom_call.1} parent=1 // pred_region
      %13 = vsyncadd [#allocation3], 0
      %s15 = sshll.u32 %s0, 4
      %s16 = int_to_ptr.hbm [resolvable:$true] %s15
      %s17 = sshll.u32 [#allocation2], 4
      %s18 = int_to_ptr.vmem [resolvable:$true] %s17
      %20 = dma.hbm_to_vmem [thread:$0]  %s16, 256, %s18, [#allocation3]
    $region5: #{tpu_custom_call.1} parent=1 // pred_fallthru
      _
    // Predicated region
    $region6: #{tpu_custom_call.1} parent=1 // pred_check
      _
    $region7: #{tpu_custom_call.1} parent=1 // pred_check_branch
      %22 = sbr.rel (0) target = $region9
    $region8: #{tpu_custom_call.1} parent=1 // pred_region
      %24 = vsyncadd [#allocation6], 0
      %s26 = sshll.u32 %s1, 4
      %s27 = int_to_ptr.hbm [resolvable:$true] %s26
      %s28 = sshll.u32 [#allocation5], 4
      %s29 = int_to_ptr.vmem [resolvable:$true] %s28
      %31 = dma.hbm_to_vmem [thread:$0]  %s27, 256, %s29, [#allocation6]
    $region9: #{tpu_custom_call.1} parent=1 // pred_fallthru
      _
    // Predicated region
    $region10: #{tpu_custom_call.1} parent=1 // pred_check
      _
    $region11: #{tpu_custom_call.1} parent=1 // pred_check_branch
      %33 = sbr.rel (0) target = $region13
    $region12: #{tpu_custom_call.1} parent=1 // pred_region
      %35 = dma.done [#allocation3], 256
    $region13: #{tpu_custom_call.1} parent=1 // pred_fallthru
      _
    // Predicated region
    $region14: #{tpu_custom_call.1} parent=1 // pred_check
      _
    $region15: #{tpu_custom_call.1} parent=1 // pred_check_branch
      %37 = sbr.rel (0) target = $region17
    $region16: #{tpu_custom_call.1} parent=1 // pred_region
      %39 = dma.done [#allocation6], 256
    $region17: #{tpu_custom_call.1} parent=1 // pred_fallthru
      _
    %v40 = vld [vmem:[#allocation2] sm:$0xff]
    %v41 = vld [vmem:[#allocation2 + $0x8] sm:$0xff]
    %v42 = vld [vmem:[#allocation5] sm:$0xff]
    %v43 = vld [vmem:[#allocation5 + $0x8] sm:$0xff]
    %v44 = vadd.f32 %v40, %v42
    %v45 = vadd.f32 %v41, %v43
    %46 = vst [vmem:[#allocation7] sm:$0xff] %v44
    %47 = vst [vmem:[#allocation7 + $0x8] sm:$0xff] %v45
    // Predicated region
    $region18: #{tpu_custom_call.1} parent=1 // pred_check
      _
    $region19: #{tpu_custom_call.1} parent=1 // pred_check_branch
      %49 = sbr.rel (0) target = $region21
    $region20: #{tpu_custom_call.1} parent=1 // pred_region
      %51 = vsyncadd [#allocation4], 0
      %s53 = sshll.u32 [#allocation7], 4
      %s54 = int_to_ptr.vmem [resolvable:$true] %s53
      %s55 = sshll.u32 %s2, 4
      %s56 = int_to_ptr.hbm [resolvable:$true] %s55
      %58 = dma.vmem_to_hbm [thread:$0]  %s54, 256, %s56, [#allocation4]
    $region21: #{tpu_custom_call.1} parent=1 // pred_fallthru
      _
    // Predicated region
    $region22: #{tpu_custom_call.1} parent=1 // pred_check
      _
    $region23: #{tpu_custom_call.1} parent=1 // pred_check_branch
      %60 = sbr.rel (0) target = $region25
    $region24: #{tpu_custom_call.1} parent=1 // pred_region
      %62 = dma.done [#allocation4], 256
    $region25: #{tpu_custom_call.1} parent=1 // pred_fallthru
      _
    %63 = vsyncpa [#allocation3], 1
    %64 = vsyncpa [#allocation6], 1
    %65 = vsyncpa [#allocation4], 1

</llo_original>
